<compile_context>
chip_gen: v7x
topology: tpu7x:2x2x1
jax: 0.10.0
libtpu: 0.0.40
codegen_flags: <defaults>
</compile_context>

<pallas_src>
import functools

import jax
import jax.numpy as jnp
from jax.experimental import pallas as pl
from jax.experimental.pallas import tpu as pltpu


def _round_up(x, m):
    return ((x + m - 1) // m) * m


def _tgml_kernel(scores_ref, labels_ref, soft_ref, margin_ref, *, inv_t, margin):
    s = scores_ref[...].astype(jnp.float32)      # (TILE_B, N) raw scores
    l = labels_ref[...].astype(jnp.float32)      # (TILE_B, N) raw teacher scores
    tb = s.shape[0]

    # ---- fused row-softmax stats: rows [:tb] = scores/T, rows [tb:] = labels/T
    stacked = jnp.concatenate([s, l], axis=0) * inv_t        # (2*TILE_B, N)
    row_max = jnp.max(stacked, axis=1, keepdims=True)        # one XLU pass
    shifted = stacked - row_max
    e = jnp.exp(shifted)                                     # EUP
    z = jnp.sum(e, axis=1, keepdims=True)                    # one XLU pass

    log_probs = shifted[:tb] - jnp.log(z[:tb])               # log_softmax(scores/T)
    e_teacher = e[tb:]
    z_teacher = z[tb:]

    # soft CE per row: -(softmax(labels/T) . log_probs)
    #                = -(1/z_teacher) * sum(e_teacher * log_probs)
    # -> one reciprocal per ROW instead of a divide per element.
    row_dot = jnp.sum(e_teacher * log_probs, axis=1, keepdims=True)   # (TILE_B, 1)
    inv_z = pl.reciprocal(z_teacher, approx=True)            # EUP slot
    inv_z = inv_z * (2.0 - z_teacher * inv_z)                # 1 Newton step
    soft_ref[...] = -(row_dot * inv_z)                       # per-row soft-CE

    # ---- teacher-weighted margin over negatives (cols 1..N-1):
    # relu over all columns minus the column-0 contribution (no iota mask).
    diffs = s - s[:, 0:1] + margin * (1.0 - l)
    relu_all = jnp.maximum(diffs, 0.0)
    col0 = jnp.maximum(margin * (1.0 - l[:, 0:1]), 0.0)
    margin_ref[...] = jnp.sum(relu_all, axis=1, keepdims=True) - col0


def teacher_guided_margin_loss(scores, labels, *,
                               temperature=0.35, margin=2.0,
                               soft_ce_weight=1.0, margin_weight=1.0,
                               tile_rows=None):
    if scores.shape != labels.shape:
        raise ValueError(f"Shape mismatch: scores {scores.shape} != labels {labels.shape}")
    B, N = scores.shape

    # Tile sizing: keep each f32 input tile around <=1 MiB so 2 inputs x 2
    # pipeline buffers plus f32 temporaries stay well under the 32 MiB scoped
    # VMEM limit on v5e/v6e/v7x, while tiles stay large enough to ride the
    # HBM roofline.
    if tile_rows is None:
        rows_budget = max(16, ((256 * 1024) // max(N, 1)) // 16 * 16)
        tile_rows = min(2048, rows_budget, _round_up(B, 16))
    tile_b = max(16, _round_up(int(tile_rows), 16))
    num_blocks = pl.cdiv(B, tile_b)

    kernel = functools.partial(
        _tgml_kernel,
        inv_t=1.0 / float(temperature),
        margin=float(margin),
    )

    cost = pl.CostEstimate(
        flops=12 * B * N,
        transcendentals=2 * B * N + 2 * B,
        bytes_accessed=B * N * (scores.dtype.itemsize + labels.dtype.itemsize)
        + 2 * B * 4,
    )

    soft_rows, margin_rows = pl.pallas_call(
        kernel,
        out_shape=(
            jax.ShapeDtypeStruct((B, 1), jnp.float32),   # per-row soft-CE
            jax.ShapeDtypeStruct((B, 1), jnp.float32),   # per-row margin sum
        ),
        grid=(num_blocks,),
        in_specs=[
            pl.BlockSpec((tile_b, N), lambda i: (i, 0)),
            pl.BlockSpec((tile_b, N), lambda i: (i, 0)),
        ],
        out_specs=(
            pl.BlockSpec((tile_b, 1), lambda i: (i, 0)),
            pl.BlockSpec((tile_b, 1), lambda i: (i, 0)),
        ),
        compiler_params=pltpu.CompilerParams(
            dimension_semantics=("parallel",),       # shard across v7x's 2 TCs
            vmem_limit_bytes=32 * 1024 * 1024,
        ),
        cost_estimate=cost,
    )(scores, labels)

    # Tiny wrapper-side finalize (means + weights) over O(B) per-row partials.
    soft_ce_loss = jnp.sum(soft_rows) / jnp.float32(B)
    margin_loss = jnp.sum(margin_rows) / jnp.float32(B * (N - 1))
    return soft_ce_weight * soft_ce_loss + margin_weight * margin_loss


def _reference(scores, labels, temperature=0.35, margin=2.0,
               soft_ce_weight=1.0, margin_weight=1.0):
    log_probs = jax.nn.log_softmax(scores / temperature, axis=1)
    teacher_probs = jax.nn.softmax(labels / temperature, axis=1)
    soft_ce = -(teacher_probs * log_probs).sum(axis=1).mean()
    pos = scores[:, 0:1]
    neg = scores[:, 1:]
    tw = labels[:, 1:]
    margin_loss = jnp.maximum(neg - pos + margin * (1.0 - tw), 0.0).mean()
    return soft_ce_weight * soft_ce + margin_weight * margin_loss


if __name__ == "__main__":
    key = jax.random.PRNGKey(0)

    # Small case matching the module's (batch_size, num_candidates) signature.
    k1, k2 = jax.random.split(key)
    B, N = 2, 8
    scores = jax.random.normal(k1, (B, N), dtype=jnp.float32)
    labels = jax.random.uniform(k2, (B, N), dtype=jnp.float32)   # teacher scores in [0,1]
    loss = jax.block_until_ready(teacher_guided_margin_loss(scores, labels))
    ref = _reference(scores, labels)
    assert jnp.allclose(loss, ref, rtol=1e-4, atol=1e-4), (loss, ref)

    # Multi-block grid + ragged last tile (tile_rows=16 -> 4 blocks, masked writeback).
    k3, k4 = jax.random.split(k1)
    B2, N2 = 50, 24
    scores2 = jax.random.normal(k3, (B2, N2), dtype=jnp.float32)
    labels2 = jax.random.uniform(k4, (B2, N2), dtype=jnp.float32)
    loss2 = jax.block_until_ready(
        teacher_guided_margin_loss(scores2, labels2, tile_rows=16))
    ref2 = _reference(scores2, labels2)
    assert jnp.allclose(loss2, ref2, rtol=1e-4, atol=1e-4), (loss2, ref2)

    print("KERNEL_OK")
</pallas_src>

<mosaic_0001>
module attributes {stable_mosaic.version = 11 : i64} {
  func.func @_tgml_kernel(%arg0: i32, %arg1: memref<16x8xf32, #tpu.memory_space<vmem>>, %arg2: memref<16x8xf32, #tpu.memory_space<vmem>>, %arg3: memref<16x1xf32, #tpu.memory_space<vmem>>, %arg4: memref<16x1xf32, #tpu.memory_space<vmem>>) attributes {dimension_semantics = [#tpu.dimension_semantics<parallel>], iteration_bounds = array<i64: 1>, scalar_prefetch = 0 : i64, scratch_operands = 0 : i64, tpu.core_type = #tpu.core_type<tc>, window_params = [{transform_indices = @transform_0, window_bounds = array<i64: 16, 8>}, {transform_indices = @transform_1, window_bounds = array<i64: 16, 8>}, {transform_indices = @transform_2, window_bounds = array<i64: 16, 1>}, {transform_indices = @transform_3, window_bounds = array<i64: 16, 1>}]} {
    %c0 = arith.constant 0 : index
    %c0_0 = arith.constant 0 : index
    %0 = vector.load %arg1[%c0, %c0_0] : memref<16x8xf32, #tpu.memory_space<vmem>>, vector<16x8xf32>
    %c0_1 = arith.constant 0 : index
    %c0_2 = arith.constant 0 : index
    %1 = vector.load %arg2[%c0_1, %c0_2] : memref<16x8xf32, #tpu.memory_space<vmem>>, vector<16x8xf32>
    %2 = tpu.concatenate %0, %1 in 0 : vector<16x8xf32>, vector<16x8xf32> -> vector<32x8xf32>
    %cst = arith.constant 2.85714293 : f32
    %3 = vector.broadcast %cst : f32 to vector<32x8xf32>
    %4 = arith.mulf %2, %3 : vector<32x8xf32>
    %cst_3 = arith.constant dense<0xFF800000> : vector<32xf32>
    %5 = vector.multi_reduction <maximumf>, %4, %cst_3 [1] : vector<32x8xf32> to vector<32xf32>
    %6 = vector.shape_cast %5 : vector<32xf32> to vector<32x1xf32>
    %7 = vector.broadcast %6 : vector<32x1xf32> to vector<32x8xf32>
    %8 = arith.subf %4, %7 : vector<32x8xf32>
    %9 = math.exp %8 : vector<32x8xf32>
    %cst_4 = arith.constant dense<0.000000e+00> : vector<32xf32>
    %10 = vector.multi_reduction <add>, %9, %cst_4 [1] : vector<32x8xf32> to vector<32xf32>
    %11 = vector.shape_cast %10 : vector<32xf32> to vector<32x1xf32>
    %12 = vector.extract_strided_slice %8 {offsets = [0, 0], sizes = [16, 8], strides = [1, 1]} : vector<32x8xf32> to vector<16x8xf32>
    %13 = vector.extract_strided_slice %11 {offsets = [0, 0], sizes = [16, 1], strides = [1, 1]} : vector<32x1xf32> to vector<16x1xf32>
    %14 = math.log %13 : vector<16x1xf32>
    %15 = vector.broadcast %14 : vector<16x1xf32> to vector<16x8xf32>
    %16 = arith.subf %12, %15 : vector<16x8xf32>
    %17 = vector.extract_strided_slice %9 {offsets = [16, 0], sizes = [16, 8], strides = [1, 1]} : vector<32x8xf32> to vector<16x8xf32>
    %18 = vector.extract_strided_slice %11 {offsets = [16, 0], sizes = [16, 1], strides = [1, 1]} : vector<32x1xf32> to vector<16x1xf32>
    %19 = arith.mulf %17, %16 : vector<16x8xf32>
    %cst_5 = arith.constant dense<0.000000e+00> : vector<16xf32>
    %20 = vector.multi_reduction <add>, %19, %cst_5 [1] : vector<16x8xf32> to vector<16xf32>
    %21 = vector.shape_cast %20 : vector<16xf32> to vector<16x1xf32>
    %22 = tpu.reciprocal %18 {approx = true} : vector<16x1xf32> -> vector<16x1xf32>
    %23 = arith.mulf %18, %22 : vector<16x1xf32>
    %cst_6 = arith.constant 2.000000e+00 : f32
    %24 = vector.broadcast %cst_6 : f32 to vector<16x1xf32>
    %25 = arith.subf %24, %23 : vector<16x1xf32>
    %26 = arith.mulf %22, %25 : vector<16x1xf32>
    %27 = arith.mulf %21, %26 : vector<16x1xf32>
    %cst_7 = arith.constant 0.000000e+00 : f32
    %28 = vector.broadcast %cst_7 : f32 to vector<16x1xf32>
    %29 = arith.subf %28, %27 : vector<16x1xf32>
    %c0_8 = arith.constant 0 : index
    %c0_9 = arith.constant 0 : index
    %30 = vector.load %arg3[%c0_8, %c0_9] : memref<16x1xf32, #tpu.memory_space<vmem>>, vector<16x1xf32>
    tpu.vector_store %arg3[%c0_8, %c0_9], %29 {strides = array<i32>} : memref<16x1xf32, #tpu.memory_space<vmem>>, vector<16x1xf32>,
    %31 = vector.extract_strided_slice %0 {offsets = [0, 0], sizes = [16, 1], strides = [1, 1]} : vector<16x8xf32> to vector<16x1xf32>
    %32 = vector.broadcast %31 : vector<16x1xf32> to vector<16x8xf32>
    %33 = arith.subf %0, %32 : vector<16x8xf32>
    %cst_10 = arith.constant 1.000000e+00 : f32
    %34 = vector.broadcast %cst_10 : f32 to vector<16x8xf32>
    %35 = arith.subf %34, %1 : vector<16x8xf32>
    %cst_11 = arith.constant 2.000000e+00 : f32
    %36 = vector.broadcast %cst_11 : f32 to vector<16x8xf32>
    %37 = arith.mulf %36, %35 : vector<16x8xf32>
    %38 = arith.addf %33, %37 : vector<16x8xf32>
    %cst_12 = arith.constant 0.000000e+00 : f32
    %39 = vector.broadcast %cst_12 : f32 to vector<16x8xf32>
    %40 = arith.maximumf %38, %39 : vector<16x8xf32>
    %41 = vector.extract_strided_slice %1 {offsets = [0, 0], sizes = [16, 1], strides = [1, 1]} : vector<16x8xf32> to vector<16x1xf32>
    %cst_13 = arith.constant 1.000000e+00 : f32
    %42 = vector.broadcast %cst_13 : f32 to vector<16x1xf32>
    %43 = arith.subf %42, %41 : vector<16x1xf32>
    %cst_14 = arith.constant 2.000000e+00 : f32
    %44 = vector.broadcast %cst_14 : f32 to vector<16x1xf32>
    %45 = arith.mulf %44, %43 : vector<16x1xf32>
    %cst_15 = arith.constant 0.000000e+00 : f32
    %46 = vector.broadcast %cst_15 : f32 to vector<16x1xf32>
    %47 = arith.maximumf %45, %46 : vector<16x1xf32>
    %cst_16 = arith.constant dense<0.000000e+00> : vector<16xf32>
    %48 = vector.multi_reduction <add>, %40, %cst_16 [1] : vector<16x8xf32> to vector<16xf32>
    %49 = vector.shape_cast %48 : vector<16xf32> to vector<16x1xf32>
    %50 = arith.subf %49, %47 : vector<16x1xf32>
    %c0_17 = arith.constant 0 : index
    %c0_18 = arith.constant 0 : index
    %51 = vector.load %arg4[%c0_17, %c0_18] : memref<16x1xf32, #tpu.memory_space<vmem>>, vector<16x1xf32>
    tpu.vector_store %arg4[%c0_17, %c0_18], %50 {strides = array<i32>} : memref<16x1xf32, #tpu.memory_space<vmem>>, vector<16x1xf32>,
    return
  }
  func.func @transform_0(%arg0: i32) -> (i32, i32) {
    %c0_i32 = arith.constant 0 : i32
    %c0_i32_0 = arith.constant 0 : i32
    return %arg0, %c0_i32 : i32, i32
  }
  func.func @transform_1(%arg0: i32) -> (i32, i32) {
    %c0_i32 = arith.constant 0 : i32
    %c0_i32_0 = arith.constant 0 : i32
    return %arg0, %c0_i32 : i32, i32
  }
  func.func @transform_2(%arg0: i32) -> (i32, i32) {
    %c0_i32 = arith.constant 0 : i32
    %c0_i32_0 = arith.constant 0 : i32
    return %arg0, %c0_i32 : i32, i32
  }
  func.func @transform_3(%arg0: i32) -> (i32, i32) {
    %c0_i32 = arith.constant 0 : i32
    %c0_i32_0 = arith.constant 0 : i32
    return %arg0, %c0_i32 : i32, i32
  }
}

</mosaic_0001>

<llo_original>
// kernel: tpu_custom_call.1
$region0: #{tpu_custom_call.1}
  #allocation0 [shape = 'u32[]', space=smem, size = 0x4, offset = 0x4, fixed_abs, tag = 'smem constant byte address 0x4 - core index']
  #allocation1 [shape = 'u32[144,128]{1,0:T(1,128)}', space=vmem, size = 0x12000, scoped, tag = 'internal scratch']
  %s0 = inlined_call_operand.hbm [shape: f32[2,8], index: 0, kind: input, shape index: {}]
  %s1 = inlined_call_operand.vmem [shape: f32[2,8], index: 1, kind: input, shape index: {}]
  %s2 = inlined_call_operand.vmem [shape: f32[2,1], index: 2, kind: output, shape index: {0}]
  %s3 = inlined_call_operand.vmem [shape: f32[2,1], index: 3, kind: output, shape index: {1}]
  %4 = xla_tuple %s2, %s3
  %s5 = sld [smem:[#allocation0]]
  $region90: #{tpu_custom_call.1} parent=0
    _
  %s7 = ssub.s32 1, %s5
  %s8 = scalar_select 0, %s7, %s5
  $region1: #{tpu_custom_call.1} parent=0
    #allocation2 [shape = 'u8[8192]{0}', space=vmem, size = 0x2000, scoped, tag = 'input window, operand 0, single buffered']
    #allocation3 [shape = 's32[1]{0}', space=sflag, size = 0x4, scoped, tag = 'scoped memory for tpu_custom_call.1']
    #allocation4 [shape = 'u8[8192]{0}', space=vmem, size = 0x2000, scoped, tag = 'output window, operand 0, single buffered']
    #allocation5 [shape = 'u8[8192]{0}', space=vmem, size = 0x2000, scoped, tag = 'output window, operand 1, single buffered']
    %9 = vsyncpa [#allocation3], 0
    // Predicated region
    $region2: #{tpu_custom_call.1} parent=1 // pred_check
      _
    $region3: #{tpu_custom_call.1} parent=1 // pred_check_branch
      %11 = sbr.rel (0) target = $region5
    $region4: #{tpu_custom_call.1} parent=1 // pred_region
      %s13 = ssub.s32 256, 32
      %14 = vsyncadd [#allocation3], %s13
      %s15 = sshll.u32 [#allocation2], 4
      %s16 = int_to_ptr.vmem [resolvable:$true] %s15
      %21 = dma.hbm_to_vmem [thread:$0]  %s0, 32, %s16, [#allocation3], 32, 32, 2
    $region5: #{tpu_custom_call.1} parent=1 // pred_fallthru
      _
    // Predicated region
    $region6: #{tpu_custom_call.1} parent=1 // pred_check
      _
    $region7: #{tpu_custom_call.1} parent=1 // pred_check_branch
      %23 = sbr.rel (0) target = $region9
    $region8: #{tpu_custom_call.1} parent=1 // pred_region
      _
    $region9: #{tpu_custom_call.1} parent=1 // pred_fallthru
      _
    // Predicated region
    $region10: #{tpu_custom_call.1} parent=1 // pred_check
      _
    $region11: #{tpu_custom_call.1} parent=1 // pred_check_branch
      %25 = sbr.rel (0) target = $region13
    $region12: #{tpu_custom_call.1} parent=1 // pred_region
      %26 = dma.done [#allocation3], 256
    $region13: #{tpu_custom_call.1} parent=1 // pred_fallthru
      _
    %v27 = vld [vmem:[#allocation2] sm:$0xff]
    %v28 = vld [vmem:[#allocation2 + $0x8] sm:$0xff]
    %v29 = vld [vmem:[%s1] sm:$0xff]
    %v30 = vld [vmem:[%s1 + $0x8] sm:$0xff]
    %v31 = vmul.f32 %v27, 2.857143
    %v32 = vmul.f32 %v28, 2.857143
    %v33 = vmul.f32 %v29, 2.857143
    %v34 = vmul.f32 %v30, 2.857143
    %vm35 = vcmask 64512
    %v36 = vsel %vm35, %v31, -inf
    %37 = vmax.xlane.f32.xlu0 %v36
    %v38 = vpop.xlane.xlu0 %37
    %v39 = vsel %vm35, %v32, -inf
    %40 = vmax.xlane.f32.xlu0 %v39
    %v41 = vpop.xlane.xlu0 %40
    %v42 = vsel %vm35, %v33, -inf
    %43 = vmax.xlane.f32.xlu0 %v42
    %v44 = vpop.xlane.xlu0 %43
    %v45 = vsel %vm35, %v34, -inf
    %46 = vmax.xlane.f32.xlu0 %v45
    %v47 = vpop.xlane.xlu0 %46
    %v48 = vsub.f32 %v31, %v38
    %v49 = vsub.f32 %v32, %v41
    %v50 = vsub.f32 %v33, %v44
    %v51 = vsub.f32 %v34, %v47
    %v52 = vmul.f32 %v48, 1.442695
    %v53 = vpow.pop %v52
    %v54 = vmul.f32 %v49, 1.442695
    %v55 = vpow.pop %v54
    %v56 = vmul.f32 %v50, 1.442695
    %v57 = vpow.pop %v56
    %v58 = vmul.f32 %v51, 1.442695
    %v59 = vpow.pop %v58
    %v60 = vsel %vm35, %v53, 0.0
    %61 = vadd.xlane.f32.xlu0 %v60
    %v62 = vpop.xlane.xlu0 %61
    %v63 = vsel %vm35, %v55, 0.0
    %64 = vadd.xlane.f32.xlu0 %v63
    %v65 = vpop.xlane.xlu0 %64
    %v66 = vsel %vm35, %v57, 0.0
    %67 = vadd.xlane.f32.xlu0 %v66
    %v68 = vpop.xlane.xlu0 %67
    %v69 = vsel %vm35, %v59, 0.0
    %70 = vadd.xlane.f32.xlu0 %v69
    %v71 = vpop.xlane.xlu0 %70
    %v72 = vlog2.pop %v62
    %v73 = vmul.f32 %v72, 0.6931472
    %v74 = vlog2.pop %v65
    %v75 = vmul.f32 %v74, 0.6931472
    %v76 = vsub.f32 %v48, %v73
    %v77 = vsub.f32 %v49, %v75
    %v78 = vmul.f32 %v57, %v76
    %v79 = vmul.f32 %v59, %v77
    %v80 = vsel %vm35, %v78, 0.0
    %81 = vadd.xlane.f32.xlu0 %v80
    %v82 = vpop.xlane.xlu0 %81
    %v83 = vsel %vm35, %v79, 0.0
    %84 = vadd.xlane.f32.xlu0 %v83
    %v85 = vpop.xlane.xlu0 %84
    %v86 = vrcp.pop %v68
    %v87 = vrcp.pop %v71
    %v88 = vmul.f32 %v68, %v86
    %v89 = vmul.f32 %v71, %v87
    %v90 = vsub.f32 2.0, %v88
    %v91 = vsub.f32 2.0, %v89
    %v92 = vmul.f32 %v86, %v90
    %v93 = vmul.f32 %v87, %v91
    %v94 = vmul.f32 %v82, %v92
    %v95 = vmul.f32 %v85, %v93
    %v96 = vsub.f32 0.0, %v94
    %v97 = vsub.f32 0.0, %v95
    %vm98 = vcmask 7168
    %99 = vst.msk [vmem:[#allocation4] sm:$0xff] %vm98, %v96
    %100 = vst.msk [vmem:[#allocation4 + $0x8] sm:$0xff] %vm98, %v97
    %102 = vset.pattern.permute.xlu0 0
    %103 = vperm.xlu0 %102, %v27
    %v104 = vpop.permute.xlu0 %103
    %107 = vset.pattern.permute.xlu0 0
    %108 = vperm.xlu0 %107, %v28
    %v109 = vpop.permute.xlu0 %108
    %v111 = vsub.f32 %v27, %v104
    %v112 = vsub.f32 %v28, %v109
    %v113 = vsub.f32 1.0, %v29
    %v114 = vsub.f32 1.0, %v30
    %v115 = vmul.f32 %v113, 2.0
    %v116 = vmul.f32 %v114, 2.0
    %v117 = vadd.f32 %v111, %v115
    %v118 = vadd.f32 %v112, %v116
    %v119 = vmax.f32 %v117, 0.0
    %v120 = vmax.f32 %v118, 0.0
    %v121 = vmax.f32 %v115, 0.0
    %v122 = vmax.f32 %v116, 0.0
    %v123 = vsel %vm35, %v119, 0.0
    %124 = vadd.xlane.f32.xlu0 %v123
    %v125 = vpop.xlane.xlu0 %124
    %v126 = vsel %vm35, %v120, 0.0
    %127 = vadd.xlane.f32.xlu0 %v126
    %v128 = vpop.xlane.xlu0 %127
    %v129 = vsub.f32 %v125, %v121
    %v130 = vsub.f32 %v128, %v122
    %131 = vst.msk [vmem:[#allocation5] sm:$0xff] %vm98, %v129
    %132 = vst.msk [vmem:[#allocation5 + $0x8] sm:$0xff] %vm98, %v130
    // Predicated region
    $region14: #{tpu_custom_call.1} parent=1 // pred_check
      _
    $region15: #{tpu_custom_call.1} parent=1 // pred_check_branch
      %134 = sbr.rel (0) target = $region17
    $region16: #{tpu_custom_call.1} parent=1 // pred_region
      // Predicated region
      $region18: #{tpu_custom_call.1} parent=16 // pred_check
        _
      $region19: #{tpu_custom_call.1} parent=16 // pred_check_branch
        %136 = sbr.rel (0) target = $region21
      $region20: #{tpu_custom_call.1} parent=16 // pred_region
        // Predicated region
        $region22: #{tpu_custom_call.1} parent=20 // pred_check
          _
        $region23: #{tpu_custom_call.1} parent=20 // pred_check_branch
          %138 = sbr.rel target = $region25
        $region24: #{tpu_custom_call.1} parent=20 // pred_region
          // Predicated region
          $region37: #{tpu_custom_call.1} parent=24 // pred_check
            _
          $region38: #{tpu_custom_call.1} parent=24 // pred_check_branch
            %153 = sbr.rel (0) target = $region40
          $region39: #{tpu_custom_call.1} parent=24 // pred_region
            loop: start=0, step=1, limit=1
            $region41: #{tpu_custom_call.1} parent=39 // loop_pre_header
              _
            $region42: #{tpu_custom_call.1} parent=39 // loop_header
              %s156 = sphi 0, %s160
              %p157 = scmp.ge.s32.totalorder %s156, 1
              %s161 = sphi [#allocation4], [#allocation4]
              %s162 = sphi %s2, %s2
            $region43: #{tpu_custom_call.1} parent=39 // loop_header_branch
              %159 = sbr.rel (%p157) target = $region47
            $region44: #{tpu_custom_call.1} parent=39 // loop_body
              %v163 = vld [vmem:[%s161] sm:$0x3]
              %164 = vst [vmem:[%s162] sm:$0x3] %v163
            $region45: #{tpu_custom_call.1} parent=39 // loop_footer
              %s160 = sadd.s32 1, %s156
            $region46: #{tpu_custom_call.1} parent=39 // loop_footer_branch
              %155 = sbr.rel target = $region42
            $region47: #{tpu_custom_call.1} parent=39 // loop_exit
              _
          $region40: #{tpu_custom_call.1} parent=24 // pred_fallthru
            _
        $region25: #{tpu_custom_call.1} parent=20 // pred_fallthru
          _
        // Predicated region
        $region26: #{tpu_custom_call.1} parent=20 // pred_check
          _
        $region27: #{tpu_custom_call.1} parent=20 // pred_check_branch
          %140 = sbr.rel (0) target = $region29
        $region28: #{tpu_custom_call.1} parent=20 // pred_region
          loop: start=0, step=1, limit=1
          $region30: #{tpu_custom_call.1} parent=28 // loop_pre_header
            _
          $region31: #{tpu_custom_call.1} parent=28 // loop_header
            %s143 = sphi 0, %s147
            %p144 = scmp.ge.s32.totalorder %s143, 1
            %s148 = sphi [#allocation4], [#allocation4]
            %s149 = sphi %s2, %s2
          $region32: #{tpu_custom_call.1} parent=28 // loop_header_branch
            %146 = sbr.rel (%p144) target = $region36
          $region33: #{tpu_custom_call.1} parent=28 // loop_body
            %v150 = vld [vmem:[%s148] sm:$0x3]
            %151 = vst [vmem:[%s149] sm:$0x3] %v150
          $region34: #{tpu_custom_call.1} parent=28 // loop_footer
            %s147 = sadd.s32 1, %s143
          $region35: #{tpu_custom_call.1} parent=28 // loop_footer_branch
            %142 = sbr.rel target = $region31
          $region36: #{tpu_custom_call.1} parent=28 // loop_exit
            _
        $region29: #{tpu_custom_call.1} parent=20 // pred_fallthru
          _
      $region21: #{tpu_custom_call.1} parent=16 // pred_fallthru
        _
      %165 = vnop
    $region17: #{tpu_custom_call.1} parent=1 // pred_fallthru
      _
    // Predicated region
    $region48: #{tpu_custom_call.1} parent=1 // pred_check
      _
    $region49: #{tpu_custom_call.1} parent=1 // pred_check_branch
      %167 = sbr.rel (0) target = $region51
    $region50: #{tpu_custom_call.1} parent=1 // pred_region
      // Predicated region
      $region52: #{tpu_custom_call.1} parent=50 // pred_check
        _
      $region53: #{tpu_custom_call.1} parent=50 // pred_check_branch
        %169 = sbr.rel (0) target = $region55
      $region54: #{tpu_custom_call.1} parent=50 // pred_region
        // Predicated region
        $region56: #{tpu_custom_call.1} parent=54 // pred_check
          _
        $region57: #{tpu_custom_call.1} parent=54 // pred_check_branch
          %171 = sbr.rel target = $region59
        $region58: #{tpu_custom_call.1} parent=54 // pred_region
          // Predicated region
          $region71: #{tpu_custom_call.1} parent=58 // pred_check
            _
          $region72: #{tpu_custom_call.1} parent=58 // pred_check_branch
            %186 = sbr.rel (0) target = $region74
          $region73: #{tpu_custom_call.1} parent=58 // pred_region
            loop: start=0, step=1, limit=1
            $region75: #{tpu_custom_call.1} parent=73 // loop_pre_header
              _
            $region76: #{tpu_custom_call.1} parent=73 // loop_header
              %s189 = sphi 0, %s193
              %p190 = scmp.ge.s32.totalorder %s189, 1
              %s194 = sphi [#allocation5], [#allocation5]
              %s195 = sphi %s3, %s3
            $region77: #{tpu_custom_call.1} parent=73 // loop_header_branch
              %192 = sbr.rel (%p190) target = $region81
            $region78: #{tpu_custom_call.1} parent=73 // loop_body
              %v196 = vld [vmem:[%s194] sm:$0x3]
              %197 = vst [vmem:[%s195] sm:$0x3] %v196
            $region79: #{tpu_custom_call.1} parent=73 // loop_footer
              %s193 = sadd.s32 1, %s189
            $region80: #{tpu_custom_call.1} parent=73 // loop_footer_branch
              %188 = sbr.rel target = $region76
            $region81: #{tpu_custom_call.1} parent=73 // loop_exit
              _
          $region74: #{tpu_custom_call.1} parent=58 // pred_fallthru
            _
        $region59: #{tpu_custom_call.1} parent=54 // pred_fallthru
          _
        // Predicated region
        $region60: #{tpu_custom_call.1} parent=54 // pred_check
          _
        $region61: #{tpu_custom_call.1} parent=54 // pred_check_branch
          %173 = sbr.rel (0) target = $region63
        $region62: #{tpu_custom_call.1} parent=54 // pred_region
          loop: start=0, step=1, limit=1
          $region64: #{tpu_custom_call.1} parent=62 // loop_pre_header
            _
          $region65: #{tpu_custom_call.1} parent=62 // loop_header
            %s176 = sphi 0, %s180
            %p177 = scmp.ge.s32.totalorder %s176, 1
            %s181 = sphi [#allocation5], [#allocation5]
            %s182 = sphi %s3, %s3
          $region66: #{tpu_custom_call.1} parent=62 // loop_header_branch
            %179 = sbr.rel (%p177) target = $region70
          $region67: #{tpu_custom_call.1} parent=62 // loop_body
            %v183 = vld [vmem:[%s181] sm:$0x3]
            %184 = vst [vmem:[%s182] sm:$0x3] %v183
          $region68: #{tpu_custom_call.1} parent=62 // loop_footer
            %s180 = sadd.s32 1, %s176
          $region69: #{tpu_custom_call.1} parent=62 // loop_footer_branch
            %175 = sbr.rel target = $region65
          $region70: #{tpu_custom_call.1} parent=62 // loop_exit
            _
        $region63: #{tpu_custom_call.1} parent=54 // pred_fallthru
          _
      $region55: #{tpu_custom_call.1} parent=50 // pred_fallthru
        _
      %198 = vnop
    $region51: #{tpu_custom_call.1} parent=1 // pred_fallthru
      _
    // Predicated region
    $region82: #{tpu_custom_call.1} parent=1 // pred_check
      _
    $region83: #{tpu_custom_call.1} parent=1 // pred_check_branch
      %200 = sbr.rel (0) target = $region85
    $region84: #{tpu_custom_call.1} parent=1 // pred_region
      _
    $region85: #{tpu_custom_call.1} parent=1 // pred_fallthru
      _
    // Predicated region
    $region86: #{tpu_custom_call.1} parent=1 // pred_check
      _
    $region87: #{tpu_custom_call.1} parent=1 // pred_check_branch
      %202 = sbr.rel (0) target = $region89
    $region88: #{tpu_custom_call.1} parent=1 // pred_region
      _
    $region89: #{tpu_custom_call.1} parent=1 // pred_fallthru
      _
    %203 = vsyncpa [#allocation3], 1

</llo_original>
